<compile_context>
chip_gen: v5e
topology: v5e:2x2
jax: 0.10.0
libtpu: 0.0.40
codegen_flags: <defaults>
</compile_context>

<pallas_src>
import math
from functools import partial

import jax
import jax.numpy as jnp
from jax import lax
from jax.experimental import pallas as pl
from jax.experimental.pallas import tpu as pltpu


def _clamp_vmem_limit(bytes_needed):
    # Never ask for more than 64 MiB (v7x physical VMEM per TensorCore) and never
    # less than the 32 MiB default scoped limit; 2x leaves double-buffer headroom.
    return int(min(64 * 1024 * 1024, max(32 * 1024 * 1024, 2 * int(bytes_needed))))


# ----------------------------------------------------------------------------
# Kernel A: ProbSparse sparsity measure, per (head, query-tile).
#   S = Q_tile @ K^T on the MXU (f32 accumulate, native input dtype).
#   count[q, k] = multiplicity of key k in the per-query random sample (shared
#   across batch/heads, built once in the wrapper).
#   M[q] = max_{count>0} S[q, k] - (1/L_K) * sum_k count[q, k] * S[q, k]
# which is exactly torch's  Q_K_sample.max(-1) - Q_K_sample.sum(-1)/L_K
# (duplicates kept in the sum, as torch.randint samples with replacement).
# ----------------------------------------------------------------------------
def _sparsity_kernel(q_ref, k_ref, cnt_ref, m_ref, *, inv_L_K):
    s = lax.dot_general(q_ref[0], k_ref[0], (((1,), (1,)), ((), ())),
                        preferred_element_type=jnp.float32)          # (TQ, L_K)
    cnt = cnt_ref[...]                                                # (TQ, L_K)
    m_max = jnp.max(jnp.where(cnt > 0.0, s, -jnp.inf), axis=-1, keepdims=True)
    m_sum = jnp.sum(cnt * s, axis=-1, keepdims=True)
    m_ref[0] = m_max - m_sum * inv_L_K                                # (TQ, 1)


# ----------------------------------------------------------------------------
# Kernel B: attention for the top-u selected queries of one head.
#   scores = Q_sel @ K^T * scale   (MXU, f32 accumulate)
#   ProbMask (causal at the original query positions) applied as one vectorized
#   compare, softmax over keys, update = attn @ V.
# Only the u updated rows are produced; the untouched context rows never enter
# the kernel.
# ----------------------------------------------------------------------------
def _topk_attention_kernel(qsel_ref, k_ref, v_ref, idx_ref, upd_ref, *,
                           scale, mask_flag, n_top, L_K):
    q_sel = qsel_ref[0]                                   # (u, D)
    k = k_ref[0]                                          # (L_K, D)
    v = v_ref[0]                                          # (L_K, D)

    scores = lax.dot_general(q_sel, k, (((1,), (1,)), ((), ())),
                             preferred_element_type=jnp.float32) * scale
    if mask_flag:
        idx_col = idx_ref[0]                              # (u, 1) int32 positions
        kpos = lax.broadcasted_iota(jnp.int32, (n_top, L_K), 1)
        scores = jnp.where(kpos > idx_col, -jnp.inf, scores)

    smax = jnp.max(scores, axis=-1, keepdims=True)
    p = jnp.exp(scores - smax)
    attn = p / jnp.sum(p, axis=-1, keepdims=True)         # exact divide (parity)

    upd = jnp.dot(attn.astype(v.dtype), v, preferred_element_type=jnp.float32)
    upd_ref[0] = upd.astype(upd_ref.dtype)


# ----------------------------------------------------------------------------
# Wrapper: layout, random key sampling, sample-count matrix, top-k, initial
# context (cumsum / mean), and the u-row scatter are linear-cost XLA glue.
# ----------------------------------------------------------------------------
def prob_attention(queries, keys, values, attn_mask=None, *, factor=5, scale=None,
                   mask_flag=True, output_attention=False,
                   sample_idx=None, sample_key=None, return_aux=False):
    """ProbSparse attention forward. queries/keys/values: (B, L, H, D).

    Returns (context, attn) with context of shape (B, H, L_Q, D) in the value
    dtype (attn is None; the output_attention=True path is not implemented).
    """
    del attn_mask  # the reference builds its own ProbMask internally
    B, L_Q, H, D = queries.shape
    _, L_K, _, _ = keys.shape
    BH = B * H
    out_dtype = values.dtype

    # (B, L, H, D) -> (B*H, L, D): one linear HBM pass; keeps every kernel block
    # (8, 128)-legal for any H.
    q = jnp.transpose(queries, (0, 2, 1, 3)).reshape(BH, L_Q, D)
    k = jnp.transpose(keys, (0, 2, 1, 3)).reshape(BH, L_K, D)
    v = jnp.transpose(values, (0, 2, 1, 3)).reshape(BH, L_K, D)

    U_part = min(int(factor * math.ceil(math.log(L_K))), L_K)   # sample_k
    u = min(int(factor * math.ceil(math.log(L_Q))), L_Q)        # n_top

    # Per-query random key sampling (with replacement), shared across B and H,
    # matching torch.randint(L_K, (L_Q, sample_k)).
    if sample_idx is None:
        if sample_key is None:
            # NOTE: deterministic when no key is supplied (unlike torch's global RNG).
            sample_key = jax.random.PRNGKey(12345)
        sample_idx = jax.random.randint(sample_key, (L_Q, U_part), 0, L_K)
    samp = sample_idx

    # ---- query tiling for kernel A (padded, never a silent full-sequence block)
    L_Qp = -(-L_Q // 8) * 8
    if L_Qp <= 512:
        TQ = L_Qp
    else:
        TQ = 256                       # multiple of 128 -> lane-dense tiles
        L_Qp = -(-L_Q // TQ) * TQ
    q_pad = q if L_Qp == L_Q else jnp.pad(q, ((0, 0), (0, L_Qp - L_Q), (0, 0)))

    # Sample multiplicities (tiny, shared by every head; duplicates accumulate).
    count = jnp.zeros((L_Qp, L_K), jnp.float32)
    count = count.at[jnp.arange(L_Q)[:, None], samp].add(1.0)

    isz = jnp.dtype(q.dtype).itemsize
    est_a = 2 * (TQ * D + L_K * D) * isz + 3 * TQ * L_K * 4 + 2 * TQ * 4

    # ---- Kernel A: sparsity measure ------------------------------------------
    # Grid order (query-tile, head): the count block only changes on the outer
    # axis, so it is fetched once per tile instead of once per head.
    m_pad = pl.pallas_call(
        partial(_sparsity_kernel, inv_L_K=1.0 / L_K),
        out_shape=jax.ShapeDtypeStruct((BH, L_Qp, 1), jnp.float32),
        grid=(L_Qp // TQ, BH),
        in_specs=[
            pl.BlockSpec((1, TQ, D), lambda i, g: (g, i, 0)),     # Q tile
            pl.BlockSpec((1, L_K, D), lambda i, g: (g, 0, 0)),    # full K of head g
            pl.BlockSpec((TQ, L_K), lambda i, g: (i, 0)),         # sample counts
        ],
        out_specs=pl.BlockSpec((1, TQ, 1), lambda i, g: (g, i, 0)),
        compiler_params=pltpu.CompilerParams(
            dimension_semantics=("parallel", "parallel"),
            vmem_limit_bytes=_clamp_vmem_limit(est_a)),
    )(q_pad, k, count)
    m = m_pad[:, :L_Q, 0]                                          # (BH, L_Q)

    # Top-u query indices per (batch, head); like torch.topk(sorted=False),
    # index ordering does not affect the result.
    index = lax.top_k(m, u)[1].astype(jnp.int32)                   # (BH, u)

    # Gather only the selected query rows (u*D per head instead of L_Q*D).
    q_sel = jnp.take_along_axis(q, index[:, :, None], axis=1)      # (BH, u, D)
    idx_lane = index[:, :, None]                                   # (BH, u, 1) int32

    scale_val = float(scale) if scale is not None else 1.0 / math.sqrt(D)

    # ---- initial context (linear cost, computed once in the wrapper) ---------
    if mask_flag:
        assert L_Q == L_K, "mask_flag=True requires L_Q == L_V (as in the reference)"
        ctx_init = jnp.cumsum(v, axis=-2).astype(out_dtype)
    else:
        v_mean = jnp.mean(v, axis=-2, keepdims=True)
        ctx_init = jnp.broadcast_to(v_mean, (BH, L_Q, D)).astype(out_dtype)

    est_b = 2 * (u * D + 2 * L_K * D + u * 4) * isz + 2 * u * L_K * 4 + 2 * u * D * 4

    # ---- Kernel B: top-u rows only --------------------------------------------
    upd = pl.pallas_call(
        partial(_topk_attention_kernel, scale=scale_val, mask_flag=mask_flag,
                n_top=u, L_K=L_K),
        out_shape=jax.ShapeDtypeStruct((BH, u, D), out_dtype),
        grid=(BH,),
        in_specs=[
            pl.BlockSpec((1, u, D), lambda g: (g, 0, 0)),          # selected Q rows
            pl.BlockSpec((1, L_K, D), lambda g: (g, 0, 0)),        # K
            pl.BlockSpec((1, L_K, D), lambda g: (g, 0, 0)),        # V
            pl.BlockSpec((1, u, 1), lambda g: (g, 0, 0)),          # selected positions
        ],
        out_specs=pl.BlockSpec((1, u, D), lambda g: (g, 0, 0)),
        compiler_params=pltpu.CompilerParams(
            dimension_semantics=("parallel",),
            vmem_limit_bytes=_clamp_vmem_limit(est_b)),
    )(q_sel, k, v, idx_lane)

    # Scatter the u updated rows into the initial context (single XLA row
    # scatter; in place on the donated cumsum buffer under jit).
    bh_idx = jnp.arange(BH)[:, None]
    context = ctx_init.at[bh_idx, index, :].set(upd)

    context = context.reshape(B, H, L_Q, D)

    if return_aux:
        aux = {"index": index.reshape(B, H, u), "sparsity": m.reshape(B, H, L_Q)}
        return context, None, aux
    # TODO(synk): output_attention=True path (dense attention map) not implemented;
    # the reference default (False) returns None. (self.dropout is unused in the
    # reference forward, so it is omitted here.)
    return context, None


# ----------------------------------------------------------------------------
# Pure-JAX references (mirror the PyTorch module) used for the self-test.
# ----------------------------------------------------------------------------
def _reference_sparsity(queries, keys, samp):
    B, L_Q, H, D = queries.shape
    _, L_K, _, _ = keys.shape
    Q = jnp.transpose(queries, (0, 2, 1, 3)).astype(jnp.float32)
    K = jnp.transpose(keys, (0, 2, 1, 3)).astype(jnp.float32)
    K_sample = K[:, :, samp, :]                                     # (B,H,L_Q,U,D)
    qk = jnp.einsum('bhqd,bhqud->bhqu', Q, K_sample,
                    precision=lax.Precision.HIGHEST)
    return qk.max(axis=-1) - qk.sum(axis=-1) / L_K                  # (B,H,L_Q)


def _reference_context_given_index(queries, keys, values, index, *, scale=None,
                                   mask_flag=True):
    B, L_Q, H, D = queries.shape
    _, L_K, _, _ = keys.shape
    Q = jnp.transpose(queries, (0, 2, 1, 3)).astype(jnp.float32)
    K = jnp.transpose(keys, (0, 2, 1, 3)).astype(jnp.float32)
    V = jnp.transpose(values, (0, 2, 1, 3)).astype(jnp.float32)
    Q_reduce = jnp.take_along_axis(Q, index[..., None], axis=2)
    scores = jnp.einsum('bhud,bhkd->bhuk', Q_reduce, K,
                        precision=lax.Precision.HIGHEST)
    scale_val = scale if scale is not None else 1.0 / math.sqrt(D)
    scores = scores * scale_val
    if mask_flag:
        kpos = jnp.arange(L_K)[None, None, None, :]
        scores = jnp.where(kpos > index[..., None], -jnp.inf, scores)
    attn = jax.nn.softmax(scores, axis=-1)
    if mask_flag:
        context = jnp.cumsum(V, axis=-2)
    else:
        context = jnp.broadcast_to(V.mean(axis=-2, keepdims=True), (B, H, L_Q, D))
    upd = jnp.einsum('bhuk,bhkd->bhud', attn, V, precision=lax.Precision.HIGHEST)
    b_idx = jnp.arange(B)[:, None, None]
    h_idx = jnp.arange(H)[None, :, None]
    context = context.at[b_idx, h_idx, index, :].set(upd)
    return context.astype(values.dtype)


if __name__ == "__main__":
    root = jax.random.PRNGKey(0)
    kq, kk, kv, ks = jax.random.split(root, 4)
    B, L, H, D = 2, 64, 4, 32
    factor = 5

    queries = jax.random.normal(kq, (B, L, H, D), jnp.float32)
    keys_in = jax.random.normal(kk, (B, L, H, D), jnp.float32)
    values = jax.random.normal(kv, (B, L, H, D), jnp.float32)

    U_part = min(int(factor * math.ceil(math.log(L))), L)
    samp = jax.random.randint(ks, (L, U_part), 0, L)      # fixed sample indices

    context, attn, aux = prob_attention(
        queries, keys_in, values, factor=factor, scale=None, mask_flag=True,
        sample_idx=samp, return_aux=True)
    context = jax.block_until_ready(context)

    assert context.shape == (B, H, L, D)
    assert context.dtype == values.dtype
    assert bool(jnp.all(jnp.isfinite(context)))

    # Check kernel A's sparsity measure against the sampled-score reference.
    m_ref = _reference_sparsity(queries, keys_in, samp)
    assert bool(jnp.allclose(aux["sparsity"], m_ref, rtol=5e-2, atol=2e-1)), (
        "sparsity mismatch: max abs err = "
        f"{float(jnp.max(jnp.abs(aux['sparsity'] - m_ref)))}")

    # Check kernel B + scatter given the kernel-selected indices (avoids
    # fragility on near-tied top-k scores).
    ctx_ref = _reference_context_given_index(
        queries, keys_in, values, aux["index"], scale=None, mask_flag=True)
    assert bool(jnp.allclose(context, ctx_ref, rtol=5e-2, atol=5e-2)), (
        "context mismatch: max abs err = "
        f"{float(jnp.max(jnp.abs(context - ctx_ref)))}")

    print("KERNEL_OK")
</pallas_src>

<mosaic_0001>
module attributes {stable_mosaic.version = 11 : i64} {
  func.func @_sparsity_kernel(%arg0: i32, %arg1: i32, %arg2: memref<1x64x32xf32, #tpu.memory_space<vmem>>, %arg3: memref<1x64x32xf32, #tpu.memory_space<vmem>>, %arg4: memref<64x64xf32, #tpu.memory_space<vmem>>, %arg5: memref<1x64x1xf32, #tpu.memory_space<vmem>>) attributes {dimension_semantics = [#tpu.dimension_semantics<parallel>, #tpu.dimension_semantics<parallel>], iteration_bounds = array<i64: 1, 8>, scalar_prefetch = 0 : i64, scratch_operands = 0 : i64, tpu.core_type = #tpu.core_type<tc>, window_params = [{transform_indices = @transform_0, window_bounds = array<i64: 1, 64, 32>}, {transform_indices = @transform_1, window_bounds = array<i64: 1, 64, 32>}, {transform_indices = @transform_2, window_bounds = array<i64: 64, 64>}, {transform_indices = @transform_3, window_bounds = array<i64: 1, 64, 1>}]} {
    %c0 = arith.constant 0 : index
    %c0_0 = arith.constant 0 : index
    %c0_1 = arith.constant 0 : index
    %0 = vector.load %arg2[%c0, %c0_0, %c0_1] : memref<1x64x32xf32, #tpu.memory_space<vmem>>, vector<1x64x32xf32>
    %1 = vector.shape_cast %0 : vector<1x64x32xf32> to vector<64x32xf32>
    %c0_2 = arith.constant 0 : index
    %c0_3 = arith.constant 0 : index
    %c0_4 = arith.constant 0 : index
    %2 = vector.load %arg3[%c0_2, %c0_3, %c0_4] : memref<1x64x32xf32, #tpu.memory_space<vmem>>, vector<1x64x32xf32>
    %3 = vector.shape_cast %2 : vector<1x64x32xf32> to vector<64x32xf32>
    %cst = arith.constant dense<0.000000e+00> : vector<64x64xf32>
    %4 = tpu.matmul %1, %3, %cst {dimension_numbers = #tpu.dot_dimension_numbers<[1], [1], [0], [0], [0, 0, 1, 0], [], []>} : vector<64x32xf32>, vector<64x32xf32>, vector<64x64xf32> -> vector<64x64xf32>
    %c0_5 = arith.constant 0 : index
    %c0_6 = arith.constant 0 : index
    %5 = vector.load %arg4[%c0_5, %c0_6] : memref<64x64xf32, #tpu.memory_space<vmem>>, vector<64x64xf32>
    %cst_7 = arith.constant 0.000000e+00 : f32
    %6 = vector.broadcast %cst_7 : f32 to vector<64x64xf32>
    %7 = arith.cmpf ogt, %5, %6 : vector<64x64xf32>
    %cst_8 = arith.constant 0xFF800000 : f32
    %8 = vector.broadcast %cst_8 : f32 to vector<64x64xf32>
    %9 = arith.select %7, %4, %8 : vector<64x64xi1>, vector<64x64xf32>
    %cst_9 = arith.constant dense<0xFF800000> : vector<64xf32>
    %10 = vector.multi_reduction <maximumf>, %9, %cst_9 [1] : vector<64x64xf32> to vector<64xf32>
    %11 = vector.shape_cast %10 : vector<64xf32> to vector<64x1xf32>
    %12 = arith.mulf %5, %4 : vector<64x64xf32>
    %cst_10 = arith.constant dense<0.000000e+00> : vector<64xf32>
    %13 = vector.multi_reduction <add>, %12, %cst_10 [1] : vector<64x64xf32> to vector<64xf32>
    %14 = vector.shape_cast %13 : vector<64xf32> to vector<64x1xf32>
    %cst_11 = arith.constant 1.562500e-02 : f32
    %15 = vector.broadcast %cst_11 : f32 to vector<64x1xf32>
    %16 = arith.mulf %14, %15 : vector<64x1xf32>
    %17 = arith.subf %11, %16 : vector<64x1xf32>
    %c0_12 = arith.constant 0 : index
    %c0_13 = arith.constant 0 : index
    %c0_14 = arith.constant 0 : index
    %18 = vector.load %arg5[%c0_12, %c0_13, %c0_14] : memref<1x64x1xf32, #tpu.memory_space<vmem>>, vector<1x64x1xf32>
    %19 = vector.shape_cast %18 : vector<1x64x1xf32> to vector<64x1xf32>
    %20 = vector.shape_cast %17 : vector<64x1xf32> to vector<1x64x1xf32>
    tpu.vector_store %arg5[%c0_12, %c0_13, %c0_14], %20 {strides = array<i32>} : memref<1x64x1xf32, #tpu.memory_space<vmem>>, vector<1x64x1xf32>,
    return
  }
  func.func @transform_0(%arg0: i32, %arg1: i32) -> (i32, i32, i32) {
    %c0_i32 = arith.constant 0 : i32
    %c0_i32_0 = arith.constant 0 : i32
    return %arg1, %arg0, %c0_i32 : i32, i32, i32
  }
  func.func @transform_1(%arg0: i32, %arg1: i32) -> (i32, i32, i32) {
    %c0_i32 = arith.constant 0 : i32
    %c0_i32_0 = arith.constant 0 : i32
    %c0_i32_1 = arith.constant 0 : i32
    return %arg1, %c0_i32, %c0_i32_0 : i32, i32, i32
  }
  func.func @transform_2(%arg0: i32, %arg1: i32) -> (i32, i32) {
    %c0_i32 = arith.constant 0 : i32
    %c0_i32_0 = arith.constant 0 : i32
    return %arg0, %c0_i32 : i32, i32
  }
  func.func @transform_3(%arg0: i32, %arg1: i32) -> (i32, i32, i32) {
    %c0_i32 = arith.constant 0 : i32
    %c0_i32_0 = arith.constant 0 : i32
    return %arg1, %arg0, %c0_i32 : i32, i32, i32
  }
}

</mosaic_0001>

<llo_original>
// kernel: tpu_custom_call.1
$region0: #{tpu_custom_call.1}
  #allocation0 [shape = 'u32[]', space=smem, size = 0x4, offset = 0x4, fixed_abs, tag = 'smem constant byte address 0x4 - core index']
  #allocation1 [shape = 'u32[72,128]{1,0:T(1,128)}', space=vmem, size = 0x9000, scoped, tag = 'internal scratch']
  %s0 = inlined_call_operand.vmem [shape: f32[8,64,32], index: 0, kind: input, shape index: {}]
  %s1 = inlined_call_operand.vmem [shape: f32[8,64,32], index: 1, kind: input, shape index: {}]
  %s2 = inlined_call_operand.vmem [shape: f32[64,64], index: 2, kind: input, shape index: {}]
  %s3 = inlined_call_operand.vmem [shape: f32[8,64,1], index: 3, kind: output, shape index: {}]
  %s4 = sld [smem:[#allocation0]]
  $region45: #{tpu_custom_call.1} parent=0
    _
  %s6 = ssub.s32 1, %s4
  %s7 = scalar_select 0, %s6, %s4
  loop: start=0, step=1, limit=10
  $region2: #{tpu_custom_call.1} parent=0 // loop_pre_header
    _
  $region3: #{tpu_custom_call.1} parent=0 // loop_header
    %s9 = sphi 0, %s13
    %p10 = scmp.ge.s32.totalorder %s9, 10
    %s16 = sphi 0, %s28
    %s17 = sphi 0, %s24
    %s18 = sphi 0, %s16
    %s19 = sphi 0, %s17
    %s20 = sphi 0, %s18
    %s21 = sphi 0, %s19
    %s33 = sphi 0, %s35
    %s36 = sphi 0, %s33
    %s37 = sphi 0, %s36
    %s53 = sphi 0, %s37
    %s59 = sphi 0, %s61
    %s62 = sphi 0, %s59
    %s63 = sphi 0, %s62
    %s79 = sphi 0, %s63
    %s85 = sphi 0, %s87
    %s88 = sphi 0, %s85
    %s89 = sphi 0, %s88
    %s105 = sphi 0, %s89
    %s113 = sphi 0, %s115
    %s116 = sphi 0, %s113
    %s117 = sphi 0, %s116
    %s133 = sphi 0, %s117
  $region4: #{tpu_custom_call.1} parent=0 // loop_header_branch
    %12 = sbr.rel (%p10) target = $region8
  $region5: #{tpu_custom_call.1} parent=0 // loop_body
    %s14 = ssub.s32 %s9, 1
    %s15 = ssub.s32 %s9, 2
    %s22 = sadd.s32 1, %s17
    %p23 = scmp.ge.s32.totalorder %s22, 8
    %s24 = scalar_select %p23, 0, %s22
    %s25 = sadd.s32 1, %s16
    %s26 = scalar_select %p23, %s25, %s16
    %p27 = scmp.ge.s32.totalorder %s26, 1
    %s28 = scalar_select %p27, 0, %s26
    %s29 = ssub.s32 %s17, %s24
    %s30 = ssub.s32 %s16, %s28
    %s31 = sor.u32 %s29, %s30
    %p32 = scmp.eq.s32.totalorder %s31, 0
    %s34 = sadd.s32 %s33, 1
    %s35 = scalar_select %p32, %s33, %s34
    %p38 = pneg %p32
    %p39 = scmp.eq.s32.totalorder %s9, 7
    %p40 = por %p38, %p39
    %p41 = scmp.ne.s32.totalorder %s33, %s36
    %p42 = scmp.eq.s32.totalorder %s9, 0
    %p43 = por %p41, %p42
    %p44 = scmp.ne.s32.totalorder %s33, %s36
    %p45 = scmp.eq.s32.totalorder %s14, 7
    %p46 = por %p44, %p45
    %p47 = scmp.ne.s32.totalorder %s36, %s37
    %p48 = scmp.eq.s32.totalorder %s14, 0
    %p49 = por %p47, %p48
    %p50 = scmp.ne.s32.totalorder %s36, %s37
    %p51 = scmp.eq.s32.totalorder %s15, 7
    %p52 = por %p50, %p51
    %p54 = scmp.ne.s32.totalorder %s37, %s53
    %p55 = scmp.eq.s32.totalorder %s15, 0
    %p56 = por %p54, %p55
    %s57 = ssub.s32 %s17, %s24
    %p58 = scmp.eq.s32.totalorder %s57, 0
    %s60 = sadd.s32 %s59, 1
    %s61 = scalar_select %p58, %s59, %s60
    %p64 = pneg %p58
    %p65 = scmp.eq.s32.totalorder %s9, 7
    %p66 = por %p64, %p65
    %p67 = scmp.ne.s32.totalorder %s59, %s62
    %p68 = scmp.eq.s32.totalorder %s9, 0
    %p69 = por %p67, %p68
    %p70 = scmp.ne.s32.totalorder %s59, %s62
    %p71 = scmp.eq.s32.totalorder %s14, 7
    %p72 = por %p70, %p71
    %p73 = scmp.ne.s32.totalorder %s62, %s63
    %p74 = scmp.eq.s32.totalorder %s14, 0
    %p75 = por %p73, %p74
    %p76 = scmp.ne.s32.totalorder %s62, %s63
    %p77 = scmp.eq.s32.totalorder %s15, 7
    %p78 = por %p76, %p77
    %p80 = scmp.ne.s32.totalorder %s63, %s79
    %p81 = scmp.eq.s32.totalorder %s15, 0
    %p82 = por %p80, %p81
    %s83 = ssub.s32 %s16, %s28
    %p84 = scmp.eq.s32.totalorder %s83, 0
    %s86 = sadd.s32 %s85, 1
    %s87 = scalar_select %p84, %s85, %s86
    %p90 = pneg %p84
    %p91 = scmp.eq.s32.totalorder %s9, 7
    %p92 = por %p90, %p91
    %p93 = scmp.ne.s32.totalorder %s85, %s88
    %p94 = scmp.eq.s32.totalorder %s9, 0
    %p95 = por %p93, %p94
    %p96 = scmp.ne.s32.totalorder %s85, %s88
    %p97 = scmp.eq.s32.totalorder %s14, 7
    %p98 = por %p96, %p97
    %p99 = scmp.ne.s32.totalorder %s88, %s89
    %p100 = scmp.eq.s32.totalorder %s14, 0
    %p101 = por %p99, %p100
    %p102 = scmp.ne.s32.totalorder %s88, %s89
    %p103 = scmp.eq.s32.totalorder %s15, 7
    %p104 = por %p102, %p103
    %p106 = scmp.ne.s32.totalorder %s89, %s105
    %p107 = scmp.eq.s32.totalorder %s15, 0
    %p108 = por %p106, %p107
    %s109 = ssub.s32 %s17, %s24
    %s110 = ssub.s32 %s16, %s28
    %s111 = sor.u32 %s109, %s110
    %p112 = scmp.eq.s32.totalorder %s111, 0
    %s114 = sadd.s32 %s113, 1
    %s115 = scalar_select %p112, %s113, %s114
    %p118 = pneg %p112
    %p119 = scmp.eq.s32.totalorder %s9, 7
    %p120 = por %p118, %p119
    %p121 = scmp.ne.s32.totalorder %s113, %s116
    %p122 = scmp.eq.s32.totalorder %s9, 0
    %p123 = por %p121, %p122
    %p124 = scmp.ne.s32.totalorder %s113, %s116
    %p125 = scmp.eq.s32.totalorder %s14, 7
    %p126 = por %p124, %p125
    %p127 = scmp.ne.s32.totalorder %s116, %s117
    %p128 = scmp.eq.s32.totalorder %s14, 0
    %p129 = por %p127, %p128
    %p130 = scmp.ne.s32.totalorder %s116, %s117
    %p131 = scmp.eq.s32.totalorder %s15, 7
    %p132 = por %p130, %p131
    %p134 = scmp.ne.s32.totalorder %s117, %s133
    %p135 = scmp.eq.s32.totalorder %s15, 0
    %p136 = por %p134, %p135
    %p137 = scmp.le.s32.totalorder 1, %s9
    %p138 = scmp.lt.s32.totalorder %s9, 9
    %p139 = pnand %p137, %p138
    %p140 = pneg %p139
    // Predicated region
    $region9: #{tpu_custom_call.1} parent=5 // pred_check
      _
    $region10: #{tpu_custom_call.1} parent=5 // pred_check_branch
      %142 = sbr.rel (%p139) target = $region12
    $region11: #{tpu_custom_call.1} parent=5 // pred_region
      %s143 = ssub.s32 %s9, 1
      // Predicated region
      $region13: #{tpu_custom_call.1} parent=11 // pred_check
        %p144 = pneg %p101
      $region14: #{tpu_custom_call.1} parent=11 // pred_check_branch
        %146 = sbr.rel (%p144) target = $region16
      $region15: #{tpu_custom_call.1} parent=11 // pred_region
        %s147 = smul.u32 8, %s18
        %p148 = scmp.lt.s32.totalorder %s147, 7
        %s149 = scalar_select %p148, %s147, 7
        %s150 = smul.addr %s149, 8
        %s151 = scalar_lea.vmem %s2, %s150
        %s152 = smul.u32 8, %s18
      $region16: #{tpu_custom_call.1} parent=11 // pred_fallthru
        _
    $region12: #{tpu_custom_call.1} parent=5 // pred_fallthru
      _
    %p153 = scmp.lt.s32.totalorder %s9, 8
    // Predicated region
    $region17: #{tpu_custom_call.1} parent=5 // pred_check
      %p154 = pneg %p153
    $region18: #{tpu_custom_call.1} parent=5 // pred_check_branch
      %156 = sbr.rel (%p154) target = $region20
    $region19: #{tpu_custom_call.1} parent=5 // pred_region
      // Predicated region
      $region21: #{tpu_custom_call.1} parent=19 // pred_check
        %p157 = pneg %p43
      $region22: #{tpu_custom_call.1} parent=19 // pred_check_branch
        %159 = sbr.rel (%p157) target = $region24
      $region23: #{tpu_custom_call.1} parent=19 // pred_region
        %s160 = smul.u32 8, %s16
        %p161 = scmp.lt.s32.totalorder %s17, 7
        %s162 = scalar_select %p161, %s17, 7
        %p163 = scmp.lt.s32.totalorder %s160, 7
        %s164 = scalar_select %p163, %s160, 7
        %s165 = smul.addr %s162, 8
        %s166 = sadd.s32 %s164, %s165
        %s167 = smul.addr %s166, 8
        %s168 = scalar_lea.vmem %s0, %s167
        %s169 = smul.u32 8, %s16
      $region24: #{tpu_custom_call.1} parent=19 // pred_fallthru
        _
      // Predicated region
      $region25: #{tpu_custom_call.1} parent=19 // pred_check
        %p170 = pneg %p69
      $region26: #{tpu_custom_call.1} parent=19 // pred_check_branch
        %172 = sbr.rel (%p170) target = $region28
      $region27: #{tpu_custom_call.1} parent=19 // pred_region
        %p173 = scmp.lt.s32.totalorder %s17, 7
        %s174 = scalar_select %p173, %s17, 7
        %s175 = smul.addr %s174, 8
        %s176 = smul.addr %s175, 8
        %s177 = scalar_lea.vmem %s1, %s176
      $region28: #{tpu_custom_call.1} parent=19 // pred_fallthru
        _
    $region20: #{tpu_custom_call.1} parent=5 // pred_fallthru
      _
    %p178 = scmp.le.s32.totalorder 1, %s9
    %p179 = scmp.lt.s32.totalorder %s9, 9
    %p180 = pnand %p178, %p179
    %p181 = pneg %p180
    // Predicated region
    $region29: #{tpu_custom_call.1} parent=5 // pred_check
      _
    $region30: #{tpu_custom_call.1} parent=5 // pred_check_branch
      %183 = sbr.rel (%p180) target = $region32
    $region31: #{tpu_custom_call.1} parent=5 // pred_region
      %s184 = ssub.s32 %s9, 1
      %s185 = smul.u32 8, %s18
      %p186 = scmp.lt.s32.totalorder %s19, 7
      %s187 = scalar_select %p186, %s19, 7
      %p188 = scmp.lt.s32.totalorder %s185, 7
      %s189 = scalar_select %p188, %s185, 7
      %s190 = smul.addr %s187, 8
      %s191 = sadd.s32 %s189, %s190
      %s192 = smul.addr %s191, 8
      %s193 = scalar_lea.vmem %s0, %s192
      %p194 = pneg %p49
      %p195 = pneg %p46
      %p196 = scmp.lt.s32.totalorder %s19, 7
      %s197 = scalar_select %p196, %s19, 7
      %s198 = smul.addr %s197, 8
      %s199 = smul.addr %s198, 8
      %s200 = scalar_lea.vmem %s1, %s199
      %p201 = pneg %p75
      %p202 = pneg %p72
      %s203 = smul.u32 8, %s18
      %p204 = scmp.lt.s32.totalorder %s203, 7
      %s205 = scalar_select %p204, %s203, 7
      %s206 = smul.addr %s205, 8
      %s207 = scalar_lea.vmem %s2, %s206
      %p208 = pneg %p101
      %p209 = pneg %p98
      %p210 = pneg %p129
      %p211 = pneg %p126
      %s212 = smul.u32 8, %s18
      %p213 = scmp.lt.s32.totalorder %s19, 7
      %s214 = scalar_select %p213, %s19, 7
      %p215 = scmp.lt.s32.totalorder %s212, 7
      %s216 = scalar_select %p215, %s212, 7
      %s217 = smul.addr %s214, 8
      %s218 = sadd.s32 %s216, %s217
      %s219 = smul.addr %s218, 8
      %s220 = scalar_lea.vmem %s3, %s219
      %s221 = smul.u32 8, %s18
      %p222 = scmp.lt.s32.totalorder %s19, 7
      %s223 = scalar_select %p222, %s19, 7
      %p224 = scmp.lt.s32.totalorder %s221, 7
      %s225 = scalar_select %p224, %s221, 7
      %s226 = smul.addr %s223, 8
      %s227 = sadd.s32 %s225, %s226
      %s228 = smul.addr %s227, 8
      %s229 = scalar_lea.vmem %s0, %s228
      %s230 = smul.u32 8, %s18
      %p231 = scmp.lt.s32.totalorder %s19, 7
      %s232 = scalar_select %p231, %s19, 7
      %s233 = smul.addr %s232, 8
      %s234 = smul.addr %s233, 8
      %s235 = scalar_lea.vmem %s1, %s234
      %s236 = smul.u32 8, %s18
      %p237 = scmp.lt.s32.totalorder %s236, 7
      %s238 = scalar_select %p237, %s236, 7
      %s239 = smul.addr %s238, 8
      %s240 = scalar_lea.vmem %s2, %s239
      %s241 = smul.u32 8, %s18
      %s242 = smul.u32 8, %s18
      %p243 = scmp.lt.s32.totalorder %s19, 7
      %s244 = scalar_select %p243, %s19, 7
      %p245 = scmp.lt.s32.totalorder %s242, 7
      %s246 = scalar_select %p245, %s242, 7
      %s247 = smul.addr %s244, 8
      %s248 = sadd.s32 %s246, %s247
      %s249 = smul.addr %s248, 8
      %s250 = scalar_lea.vmem %s3, %s249
      %s251 = smul.u32 8, %s18
      %v252 = vld [vmem:[%s229] sm:$0xff]
      %v253 = vld [vmem:[%s229 + $0x8] sm:$0xff]
      %v254 = vld [vmem:[%s229 + $0x10] sm:$0xff]
      %v255 = vld [vmem:[%s229 + $0x18] sm:$0xff]
      %v256 = vld [vmem:[%s229 + $0x20] sm:$0xff]
      %v257 = vld [vmem:[%s229 + $0x28] sm:$0xff]
      %v258 = vld [vmem:[%s229 + $0x30] sm:$0xff]
      %v259 = vld [vmem:[%s229 + $0x38] sm:$0xff]
      %v260 = vld [vmem:[%s235] sm:$0xff]
      %v261 = vld [vmem:[%s235 + $0x8] sm:$0xff]
      %v262 = vld [vmem:[%s235 + $0x10] sm:$0xff]
      %v263 = vld [vmem:[%s235 + $0x18] sm:$0xff]
      %v264 = vld [vmem:[%s235 + $0x20] sm:$0xff]
      %v265 = vld [vmem:[%s235 + $0x28] sm:$0xff]
      %v266 = vld [vmem:[%s235 + $0x30] sm:$0xff]
      %v267 = vld [vmem:[%s235 + $0x38] sm:$0xff]
      %vm268 = vcmask 261120
      %v270 = vsel %vm268, %v252, 0
      %v273 = vsel %vm268, %v253, 0
      %v276 = vsel %vm268, %v254, 0
      %v279 = vsel %vm268, %v255, 0
      %v282 = vsel %vm268, %v256, 0
      %v285 = vsel %vm268, %v257, 0
      %v288 = vsel %vm268, %v258, 0
      %v291 = vsel %vm268, %v259, 0
      %v294 = vsel %vm268, %v260, 0
      %v297 = vsel %vm268, %v261, 0
      %v300 = vsel %vm268, %v262, 0
      %v303 = vsel %vm268, %v263, 0
      %v306 = vsel %vm268, %v264, 0
      %v309 = vsel %vm268, %v265, 0
      %v312 = vsel %vm268, %v266, 0
      %v315 = vsel %vm268, %v267, 0
      %317 = vmatpush.xpose.msra.mxu0 0.0
      %318 = vmatpush.xpose.msra.mxu0 0.0
      %319 = vmatpush.xpose.msra.mxu0 0.0
      %320 = vmatpush.xpose.msra.mxu0 0.0
      %321 = vmatpush.xpose.msra.mxu0 0.0
      %322 = vmatpush.xpose.msra.mxu0 0.0
      %323 = vmatpush.xpose.msra.mxu0 0.0
      %324 = vmatpush.xpose.msra.mxu0 0.0
      %325 = vmatpush.xpose.msra.mxu0 %v315
      %326 = vmatpush.xpose.msra.mxu0 %v312
      %327 = vmatpush.xpose.msra.mxu0 %v309
      %328 = vmatpush.xpose.msra.mxu0 %v306
      %329 = vmatpush.xpose.msra.mxu0 %v303
      %330 = vmatpush.xpose.msra.mxu0 %v300
      %331 = vmatpush.xpose.msra.mxu0 %v297
      %332 = vmatpush.xpose.msra.mxu0 %v294
      %333 = vmatmul.f32.gmra.mxu0 %v270
      %v334 = vpop.f32.mrf.mxu0
      %v335 = vadd.f32 0.0, %v334
      %336 = vmatmul.f32.gmra.mxu0 %v273
      %v337 = vpop.f32.mrf.mxu0
      %v338 = vadd.f32 0.0, %v337
      %339 = vmatmul.f32.gmra.mxu0 %v276
      %v340 = vpop.f32.mrf.mxu0
      %v341 = vadd.f32 0.0, %v340
      %342 = vmatmul.f32.gmra.mxu0 %v279
      %v343 = vpop.f32.mrf.mxu0
      %v344 = vadd.f32 0.0, %v343
      %345 = vmatmul.f32.gmra.mxu0 %v282
      %v346 = vpop.f32.mrf.mxu0
      %v347 = vadd.f32 0.0, %v346
      %348 = vmatmul.f32.gmra.mxu0 %v285
      %v349 = vpop.f32.mrf.mxu0
      %v350 = vadd.f32 0.0, %v349
      %351 = vmatmul.f32.gmra.mxu0 %v288
      %v352 = vpop.f32.mrf.mxu0
      %v353 = vadd.f32 0.0, %v352
      %354 = vmatmul.f32.gmra.mxu0 %v291
      %v355 = vpop.f32.mrf.mxu0
      %v356 = vadd.f32 0.0, %v355
      %357 = vdwg.mxu0
      %v358 = vld [vmem:[%s240] sm:$0xff]
      %v359 = vld [vmem:[%s240 + $0x8] sm:$0xff]
      %v360 = vld [vmem:[%s240 + $0x10] sm:$0xff]
      %v361 = vld [vmem:[%s240 + $0x18] sm:$0xff]
      %v362 = vld [vmem:[%s240 + $0x20] sm:$0xff]
      %v363 = vld [vmem:[%s240 + $0x28] sm:$0xff]
      %v364 = vld [vmem:[%s240 + $0x30] sm:$0xff]
      %v365 = vld [vmem:[%s240 + $0x38] sm:$0xff]
      %vm366 = vcmp.gt.f32.partialorder %v358, 0.0
      %vm367 = vcmp.gt.f32.partialorder %v359, 0.0
      %vm368 = vcmp.gt.f32.partialorder %v360, 0.0
      %vm369 = vcmp.gt.f32.partialorder %v361, 0.0
      %vm370 = vcmp.gt.f32.partialorder %v362, 0.0
      %vm371 = vcmp.gt.f32.partialorder %v363, 0.0
      %vm372 = vcmp.gt.f32.partialorder %v364, 0.0
      %vm373 = vcmp.gt.f32.partialorder %v365, 0.0
      %v374 = vsel %vm366, %v335, -inf
      %v375 = vsel %vm367, %v338, -inf
      %v376 = vsel %vm368, %v341, -inf
      %v377 = vsel %vm369, %v344, -inf
      %v378 = vsel %vm370, %v347, -inf
      %v379 = vsel %vm371, %v350, -inf
      %v380 = vsel %vm372, %v353, -inf
      %v381 = vsel %vm373, %v356, -inf
      %vm382 = vcmask 523264
      %v383 = vsel %vm382, %v374, -inf
      %384 = vmax.xlane.f32.xlu0 %v383
      %v385 = vpop.xlane.xlu0 %384
      %v386 = vsel %vm382, %v375, -inf
      %387 = vmax.xlane.f32.xlu0 %v386
      %v388 = vpop.xlane.xlu0 %387
      %v389 = vsel %vm382, %v376, -inf
      %390 = vmax.xlane.f32.xlu0 %v389
      %v391 = vpop.xlane.xlu0 %390
      %v392 = vsel %vm382, %v377, -inf
      %393 = vmax.xlane.f32.xlu0 %v392
      %v394 = vpop.xlane.xlu0 %393
      %v395 = vsel %vm382, %v378, -inf
      %396 = vmax.xlane.f32.xlu0 %v395
      %v397 = vpop.xlane.xlu0 %396
      %v398 = vsel %vm382, %v379, -inf
      %399 = vmax.xlane.f32.xlu0 %v398
      %v400 = vpop.xlane.xlu0 %399
      %v401 = vsel %vm382, %v380, -inf
      %402 = vmax.xlane.f32.xlu0 %v401
      %v403 = vpop.xlane.xlu0 %402
      %v404 = vsel %vm382, %v381, -inf
      %405 = vmax.xlane.f32.xlu0 %v404
      %v406 = vpop.xlane.xlu0 %405
      %v407 = vmul.f32 %v358, %v335
      %v408 = vmul.f32 %v359, %v338
      %v409 = vmul.f32 %v360, %v341
      %v410 = vmul.f32 %v361, %v344
      %v411 = vmul.f32 %v362, %v347
      %v412 = vmul.f32 %v363, %v350
      %v413 = vmul.f32 %v364, %v353
      %v414 = vmul.f32 %v365, %v356
      %v415 = vsel %vm382, %v407, 0.0
      %416 = vadd.xlane.f32.xlu0 %v415
      %v417 = vpop.xlane.xlu0 %416
      %v418 = vsel %vm382, %v408, 0.0
      %419 = vadd.xlane.f32.xlu0 %v418
      %v420 = vpop.xlane.xlu0 %419
      %v421 = vsel %vm382, %v409, 0.0
      %422 = vadd.xlane.f32.xlu0 %v421
      %v423 = vpop.xlane.xlu0 %422
      %v424 = vsel %vm382, %v410, 0.0
      %425 = vadd.xlane.f32.xlu0 %v424
      %v426 = vpop.xlane.xlu0 %425
      %v427 = vsel %vm382, %v411, 0.0
      %428 = vadd.xlane.f32.xlu0 %v427
      %v429 = vpop.xlane.xlu0 %428
      %v430 = vsel %vm382, %v412, 0.0
      %431 = vadd.xlane.f32.xlu0 %v430
      %v432 = vpop.xlane.xlu0 %431
      %v433 = vsel %vm382, %v413, 0.0
      %434 = vadd.xlane.f32.xlu0 %v433
      %v435 = vpop.xlane.xlu0 %434
      %v436 = vsel %vm382, %v414, 0.0
      %437 = vadd.xlane.f32.xlu0 %v436
      %v438 = vpop.xlane.xlu0 %437
      %v439 = vmul.f32 %v417, 0.015625
      %v440 = vmul.f32 %v420, 0.015625
      %v441 = vmul.f32 %v423, 0.015625
      %v442 = vmul.f32 %v426, 0.015625
      %v443 = vmul.f32 %v429, 0.015625
      %v444 = vmul.f32 %v432, 0.015625
      %v445 = vmul.f32 %v435, 0.015625
      %v446 = vmul.f32 %v438, 0.015625
      %v447 = vsub.f32 %v385, %v439
      %v448 = vsub.f32 %v388, %v440
      %v449 = vsub.f32 %v391, %v441
      %v450 = vsub.f32 %v394, %v442
      %v451 = vsub.f32 %v397, %v443
      %v452 = vsub.f32 %v400, %v444
      %v453 = vsub.f32 %v403, %v445
      %v454 = vsub.f32 %v406, %v446
      %vm455 = vcmask 7168
      %456 = vst.msk [vmem:[%s250] sm:$0xff] %vm455, %v447
      %457 = vst.msk [vmem:[%s250 + $0x8] sm:$0xff] %vm455, %v448
      %458 = vst.msk [vmem:[%s250 + $0x10] sm:$0xff] %vm455, %v449
      %459 = vst.msk [vmem:[%s250 + $0x18] sm:$0xff] %vm455, %v450
      %460 = vst.msk [vmem:[%s250 + $0x20] sm:$0xff] %vm455, %v451
      %461 = vst.msk [vmem:[%s250 + $0x28] sm:$0xff] %vm455, %v452
      %462 = vst.msk [vmem:[%s250 + $0x30] sm:$0xff] %vm455, %v453
      %463 = vst.msk [vmem:[%s250 + $0x38] sm:$0xff] %vm455, %v454
      %s464 = smul.u32 8, %s18
      %p465 = scmp.lt.s32.totalorder %s19, 7
      %s466 = scalar_select %p465, %s19, 7
      %p467 = scmp.lt.s32.totalorder %s464, 7
      %s468 = scalar_select %p467, %s464, 7
      %s469 = smul.addr %s466, 8
      %s470 = sadd.s32 %s468, %s469
      %s471 = smul.addr %s470, 8
      %s472 = scalar_lea.vmem %s3, %s471
      // Predicated region
      $region33: #{tpu_custom_call.1} parent=31 // pred_check
        %p473 = pneg %p126
      $region34: #{tpu_custom_call.1} parent=31 // pred_check_branch
        %475 = sbr.rel (%p473) target = $region36
      $region35: #{tpu_custom_call.1} parent=31 // pred_region
        %s476 = smul.u32 8, %s18
      $region36: #{tpu_custom_call.1} parent=31 // pred_fallthru
        _
    $region32: #{tpu_custom_call.1} parent=5 // pred_fallthru
      _
    %p477 = scmp.le.s32.totalorder 2, %s9
    // Predicated region
    $region37: #{tpu_custom_call.1} parent=5 // pred_check
      %p478 = pneg %p477
    $region38: #{tpu_custom_call.1} parent=5 // pred_check_branch
      %480 = sbr.rel (%p478) target = $region40
    $region39: #{tpu_custom_call.1} parent=5 // pred_region
      %s481 = ssub.s32 %s9, 2
      // Predicated region
      $region41: #{tpu_custom_call.1} parent=39 // pred_check
        %p482 = pneg %p132
      $region42: #{tpu_custom_call.1} parent=39 // pred_check_branch
        %484 = sbr.rel (%p482) target = $region44
      $region43: #{tpu_custom_call.1} parent=39 // pred_region
        %s485 = smul.u32 8, %s20
        %p486 = scmp.lt.s32.totalorder %s21, 7
        %s487 = scalar_select %p486, %s21, 7
        %p488 = scmp.lt.s32.totalorder %s485, 7
        %s489 = scalar_select %p488, %s485, 7
        %s490 = smul.addr %s487, 8
        %s491 = sadd.s32 %s489, %s490
        %s492 = smul.addr %s491, 8
        %s493 = scalar_lea.vmem %s3, %s492
      $region44: #{tpu_custom_call.1} parent=39 // pred_fallthru
        _
    $region40: #{tpu_custom_call.1} parent=5 // pred_fallthru
      _
  $region6: #{tpu_custom_call.1} parent=0 // loop_footer
    %s13 = sadd.s32 1, %s9
  $region7: #{tpu_custom_call.1} parent=0 // loop_footer_branch
    %8 = sbr.rel target = $region3
  $region8: #{tpu_custom_call.1} parent=0 // loop_exit
    _

</llo_original>
